<compile_context>
chip_gen: v6e
topology: v6e:2x2x1
jax: 0.10.0
libtpu: 0.0.40
codegen_flags: <defaults>
</compile_context>

<pallas_src>
import functools

import numpy as np
import jax
import jax.numpy as jnp
from jax import lax
from jax.experimental import pallas as pl
from jax.experimental.pallas import tpu as pltpu


_PACKED_MAX_LANES = 512  # cap on L = r*c for the packed lane-dense path


def _sublane_multiple(dtype):
    """Sublane-pack multiple for the dtype (8 f32, 16 bf16, 32 int8/fp8)."""
    return max(8, 32 // jnp.dtype(dtype).itemsize)


def _tpu_memory_config():
    """(target_block_bytes, vmem_limit_bytes) gated on physical VMEM size."""
    try:
        vmem_cap = pltpu.get_tpu_info().vmem_capacity_bytes
    except Exception:
        vmem_cap = 64 * 1024 * 1024  # conservative fallback (v7x per-core VMEM)
    if vmem_cap >= 100 * 1024 * 1024:            # v5e / v6e: 128 MiB VMEM
        return 8 * 1024 * 1024, 64 * 1024 * 1024
    return 4 * 1024 * 1024, 32 * 1024 * 1024     # v7x-class: 64 MiB VMEM


# ----------------------------------------------------------------------------
# Packed, lane-dense kernel: one head's (r, c) logits live in a single
# L = r*c wide lane dimension; softmax is done per c-wide lane segment using
# XLU rolls only (no MXU).
# ----------------------------------------------------------------------------
def _packed_kernel(scale_ref, pos_ref, diag_ref, dots_ref, out_ref, *, c,
                   mask_value):
    f32 = jnp.float32
    neg_big = float(-jnp.finfo(f32).max)
    L = dots_ref.shape[-1]

    pos = pos_ref[...]                 # (1, L) int32: lane position in segment
    diag = diag_ref[...] != 0          # (1, L) bool: masked diagonal lanes

    x = dots_ref[...].astype(f32) * scale_ref[0]
    x = jnp.where(diag, mask_value, x)   # mask applied AFTER scaling

    # --- per-segment max broadcast (prefix-max, then suffix-max) -------------
    m = x
    shift = 1
    while shift < c:
        rolled = pltpu.roll(m, shift, 1)          # lane l <- lane l - shift
        m = jnp.maximum(m, jnp.where(pos >= shift, rolled, neg_big))
        shift *= 2
    shift = 1
    while shift < c:
        rolled = pltpu.roll(m, L - shift, 1)      # lane l <- lane l + shift
        m = jnp.maximum(m, jnp.where(pos < c - shift, rolled, neg_big))
        shift *= 2

    p = jnp.exp(x - m)                 # kept in f32 (review correctness note)

    # --- per-segment sum broadcast --------------------------------------------
    # Segmented prefix-sum, then a suffix-max pass: prefix sums of non-negative
    # terms are non-decreasing, so the max of the tail equals the full segment
    # sum held in the segment's last lane.
    s = p
    shift = 1
    while shift < c:
        rolled = pltpu.roll(s, shift, 1)
        s = s + jnp.where(pos >= shift, rolled, 0.0)
        shift *= 2
    shift = 1
    while shift < c:
        rolled = pltpu.roll(s, L - shift, 1)
        s = jnp.maximum(s, jnp.where(pos < c - shift, rolled, 0.0))
        shift *= 2

    out_ref[...] = (p * pl.reciprocal(s, approx=True)).astype(out_ref.dtype)


def _attn_packed(dots2, scale, r, c, target_block_bytes, vmem_limit_bytes):
    n, L = dots2.shape
    lane = np.arange(L)
    seg = lane // c
    pos = lane % c
    num_mem_k = c - r

    pos_arr = jnp.asarray(pos.reshape(1, L), dtype=jnp.int32)
    diag = jnp.asarray((pos == seg + num_mem_k).reshape(1, L), dtype=jnp.int32)

    itemsize = dots2.dtype.itemsize
    sub = _sublane_multiple(dots2.dtype)
    tb = max(sub, (target_block_bytes // (L * itemsize)) // sub * sub)
    tb = min(n, tb)
    grid = (pl.cdiv(n, tb),)

    kernel = functools.partial(
        _packed_kernel, c=c, mask_value=float(-jnp.finfo(dots2.dtype).max))

    return pl.pallas_call(
        kernel,
        out_shape=jax.ShapeDtypeStruct((n, L), dots2.dtype),
        grid=grid,
        in_specs=[
            pl.BlockSpec(memory_space=pltpu.SMEM),        # scale (1,)
            pl.BlockSpec((1, L), lambda i: (0, 0)),       # lane position in segment
            pl.BlockSpec((1, L), lambda i: (0, 0)),       # diagonal mask lanes
            pl.BlockSpec((tb, L), lambda i: (i, 0)),      # dots rows (lane-dense)
        ],
        out_specs=pl.BlockSpec((tb, L), lambda i: (i, 0)),
        compiler_params=pltpu.CompilerParams(
            dimension_semantics=("parallel",),
            vmem_limit_bytes=vmem_limit_bytes),
    )(scale, pos_arr, diag, dots2)


# ----------------------------------------------------------------------------
# Row-tiled kernel for large c (last dim already lane-dense).  The grid is
# (head-blocks, row-blocks); the row axis is only split when a full head does
# not fit in the target block size (keeps v7x inside its 64 MiB VMEM).
# ----------------------------------------------------------------------------
def _rows_kernel(scale_ref, dots_ref, out_ref, *, num_mem_k, mask_value):
    f32 = jnp.float32
    _, rr, cc = dots_ref.shape

    x = dots_ref[...].astype(f32) * scale_ref[0]
    row0 = pl.program_id(1) * rr
    row = row0 + lax.broadcasted_iota(jnp.int32, (rr, cc), 0)
    col = lax.broadcasted_iota(jnp.int32, (rr, cc), 1)
    diag = (col - row) == num_mem_k
    x = jnp.where(diag[None], mask_value, x)

    m = jnp.max(x, axis=-1, keepdims=True)
    e = jnp.exp(x - m)
    s = jnp.sum(e, axis=-1, keepdims=True)
    out_ref[...] = (e * pl.reciprocal(s, approx=True)).astype(out_ref.dtype)


def _attn_rows(dots3, scale, target_block_bytes, vmem_limit_bytes):
    n, r, c = dots3.shape
    itemsize = dots3.dtype.itemsize
    sub = _sublane_multiple(dots3.dtype)
    head_bytes = r * c * itemsize

    if head_bytes <= target_block_bytes:
        tb = min(n, max(1, target_block_bytes // head_bytes))
        tr = r
    else:
        # Huge heads: also tile r so (in + out, double-buffered) blocks stay
        # inside the scoped VMEM limit even on 64 MiB-VMEM parts.
        tb = 1
        tr = max(sub, (target_block_bytes // (c * itemsize)) // sub * sub)
        tr = min(r, tr)

    grid = (pl.cdiv(n, tb), pl.cdiv(r, tr))
    kernel = functools.partial(
        _rows_kernel, num_mem_k=c - r,
        mask_value=float(-jnp.finfo(dots3.dtype).max))

    return pl.pallas_call(
        kernel,
        out_shape=jax.ShapeDtypeStruct((n, r, c), dots3.dtype),
        grid=grid,
        in_specs=[
            pl.BlockSpec(memory_space=pltpu.SMEM),
            pl.BlockSpec((tb, tr, c), lambda i, j: (i, j, 0)),
        ],
        out_specs=pl.BlockSpec((tb, tr, c), lambda i, j: (i, j, 0)),
        compiler_params=pltpu.CompilerParams(
            dimension_semantics=("parallel", "parallel"),
            vmem_limit_bytes=vmem_limit_bytes),
    )(scale, dots3)


# ----------------------------------------------------------------------------
# Public entry point.
# ----------------------------------------------------------------------------
def attn_fn(dots, scale, *, target_block_bytes=None, vmem_limit_bytes=None):
    """Pallas equivalent of AttnFn.forward(dots) with dim=-1."""
    *lead, r, c = dots.shape
    if c < r:
        # The PyTorch module assumes c >= r (num_mem_k >= 0).
        raise ValueError(f"AttnFn expects c >= r, got r={r}, c={c}")

    if target_block_bytes is None or vmem_limit_bytes is None:
        tb_default, vl_default = _tpu_memory_config()
        target_block_bytes = target_block_bytes or tb_default
        vmem_limit_bytes = vmem_limit_bytes or vl_default

    n = 1
    for d in lead:
        n *= int(d)

    if c < 128 and r * c <= _PACKED_MAX_LANES:
        out = _attn_packed(dots.reshape(n, r * c), scale, r, c,
                           target_block_bytes, vmem_limit_bytes)
    else:
        # TODO(synk): c < 128 with r*c > _PACKED_MAX_LANES still runs lane-
        # starved through the row kernel; would need a tiled segment packing.
        out = _attn_rows(dots.reshape(n, r, c), scale,
                         target_block_bytes, vmem_limit_bytes)
    return out.reshape(dots.shape)


def attn_fn_ref(dots, scale):
    """Pure-JAX reference matching the PyTorch forward."""
    r, c = dots.shape[-2], dots.shape[-1]
    num_mem_k = c - r
    rows = jnp.arange(r)
    cols = rows + num_mem_k
    mask = jnp.zeros((r, c), dtype=bool).at[rows, cols].set(True)
    x = dots * scale[0]
    x = jnp.where(mask, -jnp.finfo(dots.dtype).max, x)
    return jax.nn.softmax(x, axis=-1)


if __name__ == "__main__":
    key = jax.random.PRNGKey(0)
    k1, k2, k3, k4 = jax.random.split(key, 4)

    # nn.Parameter(torch.tensor([1.0])) -> deterministic init
    scale = jnp.array([1.0], dtype=jnp.float32)

    # 1) Small-c shape -> packed lane-dense kernel (r*c = 128 lanes).
    dots_a = jax.random.normal(k1, (2, 4, 8, 16), dtype=jnp.float32)
    out_a = attn_fn(dots_a, scale)
    jax.block_until_ready(out_a)
    ref_a = attn_fn_ref(dots_a, scale)
    assert out_a.shape == dots_a.shape
    # tolerance relaxed slightly for pl.reciprocal(approx=True)
    assert jnp.allclose(out_a, ref_a, atol=2e-3, rtol=2e-3), "packed path mismatch"

    # 2) Wide-c shape -> row-tiled kernel (already lane-dense).
    dots_b = jax.random.normal(k2, (1, 2, 8, 256), dtype=jnp.float32)
    out_b = attn_fn(dots_b, scale)
    jax.block_until_ready(out_b)
    ref_b = attn_fn_ref(dots_b, scale)
    assert jnp.allclose(out_b, ref_b, atol=2e-3, rtol=2e-3), "row path mismatch"

    # 3) Packed path with a partial trailing block (n = 12, tb = 8).
    dots_c = jax.random.normal(k3, (3, 4, 8, 16), dtype=jnp.float32)
    out_c = attn_fn(dots_c, scale, target_block_bytes=8 * 128 * 4,
                    vmem_limit_bytes=32 * 1024 * 1024)
    jax.block_until_ready(out_c)
    ref_c = attn_fn_ref(dots_c, scale)
    assert jnp.allclose(out_c, ref_c, atol=2e-3, rtol=2e-3), "packed partial-block mismatch"

    # 4) Row path with the r-tiling grid axis exercised (small block override).
    dots_d = jax.random.normal(k4, (1, 1, 128, 512), dtype=jnp.float32)
    out_d = attn_fn(dots_d, scale, target_block_bytes=128 * 1024,
                    vmem_limit_bytes=32 * 1024 * 1024)
    jax.block_until_ready(out_d)
    ref_d = attn_fn_ref(dots_d, scale)
    assert jnp.allclose(out_d, ref_d, atol=2e-3, rtol=2e-3), "r-tiled row path mismatch"

    print("KERNEL_OK")
</pallas_src>

<mosaic_0001>
module attributes {stable_mosaic.version = 11 : i64} {
  func.func @_packed_kernel(%arg0: i32, %arg1: memref<1xf32, #tpu.memory_space<smem>>, %arg2: memref<1x128xi32, #tpu.memory_space<vmem>>, %arg3: memref<1x128xi32, #tpu.memory_space<vmem>>, %arg4: memref<8x128xf32, #tpu.memory_space<vmem>>, %arg5: memref<8x128xf32, #tpu.memory_space<vmem>>) attributes {dimension_semantics = [#tpu.dimension_semantics<parallel>], iteration_bounds = array<i64: 1>, scalar_prefetch = 0 : i64, scratch_operands = 0 : i64, tpu.core_type = #tpu.core_type<tc>, window_params = [{transform_indices = @transform_0, window_bounds = array<i64: 1>}, {pipeline_mode = #tpu.pipeline_mode<synchronous>, transform_indices = @transform_1, window_bounds = array<i64: 1, 128>}, {pipeline_mode = #tpu.pipeline_mode<synchronous>, transform_indices = @transform_2, window_bounds = array<i64: 1, 128>}, {transform_indices = @transform_3, window_bounds = array<i64: 8, 128>}, {transform_indices = @transform_4, window_bounds = array<i64: 8, 128>}]} {
    %c0 = arith.constant 0 : index
    %c0_0 = arith.constant 0 : index
    %0 = vector.load %arg2[%c0, %c0_0] : memref<1x128xi32, #tpu.memory_space<vmem>>, vector<1x128xi32>
    %c0_1 = arith.constant 0 : index
    %c0_2 = arith.constant 0 : index
    %1 = vector.load %arg3[%c0_1, %c0_2] : memref<1x128xi32, #tpu.memory_space<vmem>>, vector<1x128xi32>
    %c0_i32 = arith.constant 0 : i32
    %2 = vector.broadcast %c0_i32 : i32 to vector<1x128xi32>
    %3 = arith.cmpi ne, %1, %2 : vector<1x128xi32>
    %c0_3 = arith.constant 0 : index
    %c0_4 = arith.constant 0 : index
    %4 = vector.load %arg4[%c0_3, %c0_4] : memref<8x128xf32, #tpu.memory_space<vmem>>, vector<8x128xf32>
    %c0_5 = arith.constant 0 : index
    %5 = memref.load %arg1[%c0_5] : memref<1xf32, #tpu.memory_space<smem>>
    %6 = vector.broadcast %5 : f32 to vector<8x128xf32>
    %7 = arith.mulf %4, %6 : vector<8x128xf32>
    %cst = arith.constant -3.40282347E+38 : f32
    %8 = vector.shape_cast %3 : vector<1x128xi1> to vector<1x128xi1>
    %9 = vector.broadcast %8 : vector<1x128xi1> to vector<8x128xi1>
    %10 = vector.broadcast %cst : f32 to vector<8x128xf32>
    %11 = arith.select %9, %10, %7 : vector<8x128xi1>, vector<8x128xf32>
    %c1_i32 = arith.constant 1 : i32
    %12 = tpu.dynamic_rotate %11 by %c1_i32 dim 1 : vector<8x128xf32>, i32 -> vector<8x128xf32>
    %c1_i32_6 = arith.constant 1 : i32
    %13 = vector.broadcast %c1_i32_6 : i32 to vector<1x128xi32>
    %14 = arith.cmpi sge, %0, %13 : vector<1x128xi32>
    %cst_7 = arith.constant -3.40282347E+38 : f32
    %15 = vector.shape_cast %14 : vector<1x128xi1> to vector<1x128xi1>
    %16 = vector.broadcast %15 : vector<1x128xi1> to vector<8x128xi1>
    %17 = vector.broadcast %cst_7 : f32 to vector<8x128xf32>
    %18 = arith.select %16, %12, %17 : vector<8x128xi1>, vector<8x128xf32>
    %19 = arith.maximumf %11, %18 : vector<8x128xf32>
    %c2_i32 = arith.constant 2 : i32
    %20 = tpu.dynamic_rotate %19 by %c2_i32 dim 1 : vector<8x128xf32>, i32 -> vector<8x128xf32>
    %c2_i32_8 = arith.constant 2 : i32
    %21 = vector.broadcast %c2_i32_8 : i32 to vector<1x128xi32>
    %22 = arith.cmpi sge, %0, %21 : vector<1x128xi32>
    %cst_9 = arith.constant -3.40282347E+38 : f32
    %23 = vector.shape_cast %22 : vector<1x128xi1> to vector<1x128xi1>
    %24 = vector.broadcast %23 : vector<1x128xi1> to vector<8x128xi1>
    %25 = vector.broadcast %cst_9 : f32 to vector<8x128xf32>
    %26 = arith.select %24, %20, %25 : vector<8x128xi1>, vector<8x128xf32>
    %27 = arith.maximumf %19, %26 : vector<8x128xf32>
    %c4_i32 = arith.constant 4 : i32
    %28 = tpu.dynamic_rotate %27 by %c4_i32 dim 1 : vector<8x128xf32>, i32 -> vector<8x128xf32>
    %c4_i32_10 = arith.constant 4 : i32
    %29 = vector.broadcast %c4_i32_10 : i32 to vector<1x128xi32>
    %30 = arith.cmpi sge, %0, %29 : vector<1x128xi32>
    %cst_11 = arith.constant -3.40282347E+38 : f32
    %31 = vector.shape_cast %30 : vector<1x128xi1> to vector<1x128xi1>
    %32 = vector.broadcast %31 : vector<1x128xi1> to vector<8x128xi1>
    %33 = vector.broadcast %cst_11 : f32 to vector<8x128xf32>
    %34 = arith.select %32, %28, %33 : vector<8x128xi1>, vector<8x128xf32>
    %35 = arith.maximumf %27, %34 : vector<8x128xf32>
    %c8_i32 = arith.constant 8 : i32
    %36 = tpu.dynamic_rotate %35 by %c8_i32 dim 1 : vector<8x128xf32>, i32 -> vector<8x128xf32>
    %c8_i32_12 = arith.constant 8 : i32
    %37 = vector.broadcast %c8_i32_12 : i32 to vector<1x128xi32>
    %38 = arith.cmpi sge, %0, %37 : vector<1x128xi32>
    %cst_13 = arith.constant -3.40282347E+38 : f32
    %39 = vector.shape_cast %38 : vector<1x128xi1> to vector<1x128xi1>
    %40 = vector.broadcast %39 : vector<1x128xi1> to vector<8x128xi1>
    %41 = vector.broadcast %cst_13 : f32 to vector<8x128xf32>
    %42 = arith.select %40, %36, %41 : vector<8x128xi1>, vector<8x128xf32>
    %43 = arith.maximumf %35, %42 : vector<8x128xf32>
    %c127_i32 = arith.constant 127 : i32
    %44 = tpu.dynamic_rotate %43 by %c127_i32 dim 1 : vector<8x128xf32>, i32 -> vector<8x128xf32>
    %c15_i32 = arith.constant 15 : i32
    %45 = vector.broadcast %c15_i32 : i32 to vector<1x128xi32>
    %46 = arith.cmpi slt, %0, %45 : vector<1x128xi32>
    %cst_14 = arith.constant -3.40282347E+38 : f32
    %47 = vector.shape_cast %46 : vector<1x128xi1> to vector<1x128xi1>
    %48 = vector.broadcast %47 : vector<1x128xi1> to vector<8x128xi1>
    %49 = vector.broadcast %cst_14 : f32 to vector<8x128xf32>
    %50 = arith.select %48, %44, %49 : vector<8x128xi1>, vector<8x128xf32>
    %51 = arith.maximumf %43, %50 : vector<8x128xf32>
    %c126_i32 = arith.constant 126 : i32
    %52 = tpu.dynamic_rotate %51 by %c126_i32 dim 1 : vector<8x128xf32>, i32 -> vector<8x128xf32>
    %c14_i32 = arith.constant 14 : i32
    %53 = vector.broadcast %c14_i32 : i32 to vector<1x128xi32>
    %54 = arith.cmpi slt, %0, %53 : vector<1x128xi32>
    %cst_15 = arith.constant -3.40282347E+38 : f32
    %55 = vector.shape_cast %54 : vector<1x128xi1> to vector<1x128xi1>
    %56 = vector.broadcast %55 : vector<1x128xi1> to vector<8x128xi1>
    %57 = vector.broadcast %cst_15 : f32 to vector<8x128xf32>
    %58 = arith.select %56, %52, %57 : vector<8x128xi1>, vector<8x128xf32>
    %59 = arith.maximumf %51, %58 : vector<8x128xf32>
    %c124_i32 = arith.constant 124 : i32
    %60 = tpu.dynamic_rotate %59 by %c124_i32 dim 1 : vector<8x128xf32>, i32 -> vector<8x128xf32>
    %c12_i32 = arith.constant 12 : i32
    %61 = vector.broadcast %c12_i32 : i32 to vector<1x128xi32>
    %62 = arith.cmpi slt, %0, %61 : vector<1x128xi32>
    %cst_16 = arith.constant -3.40282347E+38 : f32
    %63 = vector.shape_cast %62 : vector<1x128xi1> to vector<1x128xi1>
    %64 = vector.broadcast %63 : vector<1x128xi1> to vector<8x128xi1>
    %65 = vector.broadcast %cst_16 : f32 to vector<8x128xf32>
    %66 = arith.select %64, %60, %65 : vector<8x128xi1>, vector<8x128xf32>
    %67 = arith.maximumf %59, %66 : vector<8x128xf32>
    %c120_i32 = arith.constant 120 : i32
    %68 = tpu.dynamic_rotate %67 by %c120_i32 dim 1 : vector<8x128xf32>, i32 -> vector<8x128xf32>
    %c8_i32_17 = arith.constant 8 : i32
    %69 = vector.broadcast %c8_i32_17 : i32 to vector<1x128xi32>
    %70 = arith.cmpi slt, %0, %69 : vector<1x128xi32>
    %cst_18 = arith.constant -3.40282347E+38 : f32
    %71 = vector.shape_cast %70 : vector<1x128xi1> to vector<1x128xi1>
    %72 = vector.broadcast %71 : vector<1x128xi1> to vector<8x128xi1>
    %73 = vector.broadcast %cst_18 : f32 to vector<8x128xf32>
    %74 = arith.select %72, %68, %73 : vector<8x128xi1>, vector<8x128xf32>
    %75 = arith.maximumf %67, %74 : vector<8x128xf32>
    %76 = arith.subf %11, %75 : vector<8x128xf32>
    %77 = math.exp %76 : vector<8x128xf32>
    %c1_i32_19 = arith.constant 1 : i32
    %78 = tpu.dynamic_rotate %77 by %c1_i32_19 dim 1 : vector<8x128xf32>, i32 -> vector<8x128xf32>
    %c1_i32_20 = arith.constant 1 : i32
    %79 = vector.broadcast %c1_i32_20 : i32 to vector<1x128xi32>
    %80 = arith.cmpi sge, %0, %79 : vector<1x128xi32>
    %cst_21 = arith.constant 0.000000e+00 : f32
    %81 = vector.shape_cast %80 : vector<1x128xi1> to vector<1x128xi1>
    %82 = vector.broadcast %81 : vector<1x128xi1> to vector<8x128xi1>
    %83 = vector.broadcast %cst_21 : f32 to vector<8x128xf32>
    %84 = arith.select %82, %78, %83 : vector<8x128xi1>, vector<8x128xf32>
    %85 = arith.addf %77, %84 : vector<8x128xf32>
    %c2_i32_22 = arith.constant 2 : i32
    %86 = tpu.dynamic_rotate %85 by %c2_i32_22 dim 1 : vector<8x128xf32>, i32 -> vector<8x128xf32>
    %c2_i32_23 = arith.constant 2 : i32
    %87 = vector.broadcast %c2_i32_23 : i32 to vector<1x128xi32>
    %88 = arith.cmpi sge, %0, %87 : vector<1x128xi32>
    %cst_24 = arith.constant 0.000000e+00 : f32
    %89 = vector.shape_cast %88 : vector<1x128xi1> to vector<1x128xi1>
    %90 = vector.broadcast %89 : vector<1x128xi1> to vector<8x128xi1>
    %91 = vector.broadcast %cst_24 : f32 to vector<8x128xf32>
    %92 = arith.select %90, %86, %91 : vector<8x128xi1>, vector<8x128xf32>
    %93 = arith.addf %85, %92 : vector<8x128xf32>
    %c4_i32_25 = arith.constant 4 : i32
    %94 = tpu.dynamic_rotate %93 by %c4_i32_25 dim 1 : vector<8x128xf32>, i32 -> vector<8x128xf32>
    %c4_i32_26 = arith.constant 4 : i32
    %95 = vector.broadcast %c4_i32_26 : i32 to vector<1x128xi32>
    %96 = arith.cmpi sge, %0, %95 : vector<1x128xi32>
    %cst_27 = arith.constant 0.000000e+00 : f32
    %97 = vector.shape_cast %96 : vector<1x128xi1> to vector<1x128xi1>
    %98 = vector.broadcast %97 : vector<1x128xi1> to vector<8x128xi1>
    %99 = vector.broadcast %cst_27 : f32 to vector<8x128xf32>
    %100 = arith.select %98, %94, %99 : vector<8x128xi1>, vector<8x128xf32>
    %101 = arith.addf %93, %100 : vector<8x128xf32>
    %c8_i32_28 = arith.constant 8 : i32
    %102 = tpu.dynamic_rotate %101 by %c8_i32_28 dim 1 : vector<8x128xf32>, i32 -> vector<8x128xf32>
    %c8_i32_29 = arith.constant 8 : i32
    %103 = vector.broadcast %c8_i32_29 : i32 to vector<1x128xi32>
    %104 = arith.cmpi sge, %0, %103 : vector<1x128xi32>
    %cst_30 = arith.constant 0.000000e+00 : f32
    %105 = vector.shape_cast %104 : vector<1x128xi1> to vector<1x128xi1>
    %106 = vector.broadcast %105 : vector<1x128xi1> to vector<8x128xi1>
    %107 = vector.broadcast %cst_30 : f32 to vector<8x128xf32>
    %108 = arith.select %106, %102, %107 : vector<8x128xi1>, vector<8x128xf32>
    %109 = arith.addf %101, %108 : vector<8x128xf32>
    %c127_i32_31 = arith.constant 127 : i32
    %110 = tpu.dynamic_rotate %109 by %c127_i32_31 dim 1 : vector<8x128xf32>, i32 -> vector<8x128xf32>
    %c15_i32_32 = arith.constant 15 : i32
    %111 = vector.broadcast %c15_i32_32 : i32 to vector<1x128xi32>
    %112 = arith.cmpi slt, %0, %111 : vector<1x128xi32>
    %cst_33 = arith.constant 0.000000e+00 : f32
    %113 = vector.shape_cast %112 : vector<1x128xi1> to vector<1x128xi1>
    %114 = vector.broadcast %113 : vector<1x128xi1> to vector<8x128xi1>
    %115 = vector.broadcast %cst_33 : f32 to vector<8x128xf32>
    %116 = arith.select %114, %110, %115 : vector<8x128xi1>, vector<8x128xf32>
    %117 = arith.maximumf %109, %116 : vector<8x128xf32>
    %c126_i32_34 = arith.constant 126 : i32
    %118 = tpu.dynamic_rotate %117 by %c126_i32_34 dim 1 : vector<8x128xf32>, i32 -> vector<8x128xf32>
    %c14_i32_35 = arith.constant 14 : i32
    %119 = vector.broadcast %c14_i32_35 : i32 to vector<1x128xi32>
    %120 = arith.cmpi slt, %0, %119 : vector<1x128xi32>
    %cst_36 = arith.constant 0.000000e+00 : f32
    %121 = vector.shape_cast %120 : vector<1x128xi1> to vector<1x128xi1>
    %122 = vector.broadcast %121 : vector<1x128xi1> to vector<8x128xi1>
    %123 = vector.broadcast %cst_36 : f32 to vector<8x128xf32>
    %124 = arith.select %122, %118, %123 : vector<8x128xi1>, vector<8x128xf32>
    %125 = arith.maximumf %117, %124 : vector<8x128xf32>
    %c124_i32_37 = arith.constant 124 : i32
    %126 = tpu.dynamic_rotate %125 by %c124_i32_37 dim 1 : vector<8x128xf32>, i32 -> vector<8x128xf32>
    %c12_i32_38 = arith.constant 12 : i32
    %127 = vector.broadcast %c12_i32_38 : i32 to vector<1x128xi32>
    %128 = arith.cmpi slt, %0, %127 : vector<1x128xi32>
    %cst_39 = arith.constant 0.000000e+00 : f32
    %129 = vector.shape_cast %128 : vector<1x128xi1> to vector<1x128xi1>
    %130 = vector.broadcast %129 : vector<1x128xi1> to vector<8x128xi1>
    %131 = vector.broadcast %cst_39 : f32 to vector<8x128xf32>
    %132 = arith.select %130, %126, %131 : vector<8x128xi1>, vector<8x128xf32>
    %133 = arith.maximumf %125, %132 : vector<8x128xf32>
    %c120_i32_40 = arith.constant 120 : i32
    %134 = tpu.dynamic_rotate %133 by %c120_i32_40 dim 1 : vector<8x128xf32>, i32 -> vector<8x128xf32>
    %c8_i32_41 = arith.constant 8 : i32
    %135 = vector.broadcast %c8_i32_41 : i32 to vector<1x128xi32>
    %136 = arith.cmpi slt, %0, %135 : vector<1x128xi32>
    %cst_42 = arith.constant 0.000000e+00 : f32
    %137 = vector.shape_cast %136 : vector<1x128xi1> to vector<1x128xi1>
    %138 = vector.broadcast %137 : vector<1x128xi1> to vector<8x128xi1>
    %139 = vector.broadcast %cst_42 : f32 to vector<8x128xf32>
    %140 = arith.select %138, %134, %139 : vector<8x128xi1>, vector<8x128xf32>
    %141 = arith.maximumf %133, %140 : vector<8x128xf32>
    %142 = tpu.reciprocal %141 {approx = true} : vector<8x128xf32> -> vector<8x128xf32>
    %143 = arith.mulf %77, %142 : vector<8x128xf32>
    %c0_43 = arith.constant 0 : index
    %c0_44 = arith.constant 0 : index
    %144 = vector.load %arg5[%c0_43, %c0_44] : memref<8x128xf32, #tpu.memory_space<vmem>>, vector<8x128xf32>
    tpu.vector_store %arg5[%c0_43, %c0_44], %143 {strides = array<i32>} : memref<8x128xf32, #tpu.memory_space<vmem>>, vector<8x128xf32>,
    return
  }
  func.func @transform_0(%arg0: i32) -> i32 {
    %c0_i32 = arith.constant 0 : i32
    %c0_i32_0 = arith.constant 0 : i32
    return %c0_i32 : i32
  }
  func.func @transform_1(%arg0: i32) -> (i32, i32) {
    %c0_i32 = arith.constant 0 : i32
    %c0_i32_0 = arith.constant 0 : i32
    %c0_i32_1 = arith.constant 0 : i32
    return %c0_i32, %c0_i32_0 : i32, i32
  }
  func.func @transform_2(%arg0: i32) -> (i32, i32) {
    %c0_i32 = arith.constant 0 : i32
    %c0_i32_0 = arith.constant 0 : i32
    %c0_i32_1 = arith.constant 0 : i32
    return %c0_i32, %c0_i32_0 : i32, i32
  }
  func.func @transform_3(%arg0: i32) -> (i32, i32) {
    %c0_i32 = arith.constant 0 : i32
    %c0_i32_0 = arith.constant 0 : i32
    return %arg0, %c0_i32 : i32, i32
  }
  func.func @transform_4(%arg0: i32) -> (i32, i32) {
    %c0_i32 = arith.constant 0 : i32
    %c0_i32_0 = arith.constant 0 : i32
    return %arg0, %c0_i32 : i32, i32
  }
}

</mosaic_0001>

<llo_original>
// kernel: tpu_custom_call.1
$region0: #{tpu_custom_call.1}
  #allocation0 [shape = 'u32[]', space=smem, size = 0x4, offset = 0x4, fixed_abs, tag = 'smem constant byte address 0x4 - core index']
  #allocation1 [shape = 'u32[144,128]{1,0:T(1,128)}', space=vmem, size = 0x12000, scoped, tag = 'internal scratch']
  #allocation2 [shape = 'f32[1]{0:T(128)S(6)}', space=smem, size = 0x200, scoped, tag = 'scoped memory for tpu_custom_call.1']
  %s0 = inlined_call_operand.<no memory space> [shape: f32[1], index: 0, kind: input, shape index: {}]
  %s1 = inlined_call_operand.vmem [shape: s32[1,128], index: 1, kind: input, shape index: {}]
  %s2 = inlined_call_operand.vmem [shape: s32[1,128], index: 2, kind: input, shape index: {}]
  %s3 = inlined_call_operand.hbm [shape: f32[8,128], index: 3, kind: input, shape index: {}]
  %s4 = inlined_call_operand.hbm [shape: f32[8,128], index: 4, kind: output, shape index: {}]
  %s5 = sld [smem:[#allocation0]]
  $region30: #{tpu_custom_call.1} parent=0
    _
  %s7 = ssub.s32 1, %s5
  %s8 = scalar_select 0, %s7, %s5
  %9 = sst [smem:[#allocation2]] %s0
  $region1: #{tpu_custom_call.1} parent=0
    #allocation3 [shape = 'u8[4096]{0}', space=vmem, size = 0x1000, scoped, tag = 'input window, operand 3, single buffered']
    #allocation4 [shape = 's32[1]{0}', space=sflag, size = 0x4, scoped, tag = 'scoped memory for tpu_custom_call.1']
    #allocation5 [shape = 's32[1]{0}', space=sflag, size = 0x4, scoped, tag = 'scoped memory for tpu_custom_call.1']
    #allocation6 [shape = 'u8[4096]{0}', space=vmem, size = 0x1000, scoped, tag = 'output window, operand 0, single buffered']
    %10 = vsyncpa [#allocation4], 0
    %11 = vsyncpa [#allocation5], 0
    // Predicated region
    $region2: #{tpu_custom_call.1} parent=1 // pred_check
      _
    $region3: #{tpu_custom_call.1} parent=1 // pred_check_branch
      %13 = sbr.rel (0) target = $region5
    $region4: #{tpu_custom_call.1} parent=1 // pred_region
      _
    $region5: #{tpu_custom_call.1} parent=1 // pred_fallthru
      _
    // Predicated region
    $region6: #{tpu_custom_call.1} parent=1 // pred_check
      _
    $region7: #{tpu_custom_call.1} parent=1 // pred_check_branch
      %15 = sbr.rel (0) target = $region9
    $region8: #{tpu_custom_call.1} parent=1 // pred_region
      _
    $region9: #{tpu_custom_call.1} parent=1 // pred_fallthru
      _
    // Predicated region
    $region10: #{tpu_custom_call.1} parent=1 // pred_check
      _
    $region11: #{tpu_custom_call.1} parent=1 // pred_check_branch
      %17 = sbr.rel (0) target = $region13
    $region12: #{tpu_custom_call.1} parent=1 // pred_region
      _
    $region13: #{tpu_custom_call.1} parent=1 // pred_fallthru
      _
    // Predicated region
    $region14: #{tpu_custom_call.1} parent=1 // pred_check
      _
    $region15: #{tpu_custom_call.1} parent=1 // pred_check_branch
      %19 = sbr.rel (0) target = $region17
    $region16: #{tpu_custom_call.1} parent=1 // pred_region
      %s21 = ssub.s32 128, 128
      %22 = vsyncadd [#allocation4], %s21
      %s24 = sshll.u32 [#allocation3], 4
      %s25 = int_to_ptr.vmem [resolvable:$true] %s24
      %27 = dma.hbm_to_vmem [thread:$0]  %s3, 128, %s25, [#allocation4]
    $region17: #{tpu_custom_call.1} parent=1 // pred_fallthru
      _
    // Predicated region
    $region18: #{tpu_custom_call.1} parent=1 // pred_check
      _
    $region19: #{tpu_custom_call.1} parent=1 // pred_check_branch
      %29 = sbr.rel (0) target = $region21
    $region20: #{tpu_custom_call.1} parent=1 // pred_region
      %30 = dma.done [#allocation4], 128
    $region21: #{tpu_custom_call.1} parent=1 // pred_fallthru
      _
    %v31 = vld [vmem:[%s1] sm:$0x1]
    %v32 = vld [vmem:[%s2] sm:$0x1]
    %vm33 = vcmp.ne.s32.totalorder %v32, 0
    %v34 = vld [vmem:[#allocation3] sm:$0xff]
    %s35 = sld [smem:[#allocation2]]
    %v36 = vstv %s35
    %v37 = vmul.f32 %v34, %v36
    %v38 = vsel %vm33, 1, 0
    %v39 = vlaneseq
    %v40 = vshrl.u32 %v39, 7
    %v41 = vsub.s32 0, %v40
    %v42 = vrot.slane %v38, %v41
    %vm43 = vcmp.eq.s32.totalorder %v42, 1
    %v44 = vsel %vm43, -3.4028235e+38, %v37
    %45 = vrot.lane.b32.xlu0 %v44, 1
    %v46 = vpop.permute.xlu0 %45
    %vm47 = vcmp.ge.s32.totalorder %v31, 1
    %v48 = vsel %vm47, 1, 0
    %v49 = vlaneseq
    %v50 = vshrl.u32 %v49, 7
    %v51 = vsub.s32 0, %v50
    %v52 = vrot.slane %v48, %v51
    %vm53 = vcmp.eq.s32.totalorder %v52, 1
    %v54 = vsel %vm53, %v46, -3.4028235e+38
    %v55 = vmax.f32 %v44, %v54
    %56 = vrot.lane.b32.xlu0 %v55, 2
    %v57 = vpop.permute.xlu0 %56
    %vm58 = vcmp.ge.s32.totalorder %v31, 2
    %v59 = vsel %vm58, 1, 0
    %v60 = vlaneseq
    %v61 = vshrl.u32 %v60, 7
    %v62 = vsub.s32 0, %v61
    %v63 = vrot.slane %v59, %v62
    %vm64 = vcmp.eq.s32.totalorder %v63, 1
    %v65 = vsel %vm64, %v57, -3.4028235e+38
    %v66 = vmax.f32 %v55, %v65
    %67 = vrot.lane.b32.xlu0 %v66, 4
    %v68 = vpop.permute.xlu0 %67
    %vm69 = vcmp.ge.s32.totalorder %v31, 4
    %v70 = vsel %vm69, 1, 0
    %v71 = vlaneseq
    %v72 = vshrl.u32 %v71, 7
    %v73 = vsub.s32 0, %v72
    %v74 = vrot.slane %v70, %v73
    %vm75 = vcmp.eq.s32.totalorder %v74, 1
    %v76 = vsel %vm75, %v68, -3.4028235e+38
    %v77 = vmax.f32 %v66, %v76
    %78 = vrot.lane.b32.xlu0 %v77, 8
    %v79 = vpop.permute.xlu0 %78
    %vm80 = vcmp.ge.s32.totalorder %v31, 8
    %v81 = vsel %vm80, 1, 0
    %v82 = vlaneseq
    %v83 = vshrl.u32 %v82, 7
    %v84 = vsub.s32 0, %v83
    %v85 = vrot.slane %v81, %v84
    %vm86 = vcmp.eq.s32.totalorder %v85, 1
    %v87 = vsel %vm86, %v79, -3.4028235e+38
    %v88 = vmax.f32 %v77, %v87
    %89 = vrot.lane.b32.xlu0 %v88, 127
    %v90 = vpop.permute.xlu0 %89
    %vm91 = vcmp.lt.s32.totalorder %v31, 15
    %v92 = vsel %vm91, 1, 0
    %v93 = vlaneseq
    %v94 = vshrl.u32 %v93, 7
    %v95 = vsub.s32 0, %v94
    %v96 = vrot.slane %v92, %v95
    %vm97 = vcmp.eq.s32.totalorder %v96, 1
    %v98 = vsel %vm97, %v90, -3.4028235e+38
    %v99 = vmax.f32 %v88, %v98
    %100 = vrot.lane.b32.xlu0 %v99, 126
    %v101 = vpop.permute.xlu0 %100
    %vm102 = vcmp.lt.s32.totalorder %v31, 14
    %v103 = vsel %vm102, 1, 0
    %v104 = vlaneseq
    %v105 = vshrl.u32 %v104, 7
    %v106 = vsub.s32 0, %v105
    %v107 = vrot.slane %v103, %v106
    %vm108 = vcmp.eq.s32.totalorder %v107, 1
    %v109 = vsel %vm108, %v101, -3.4028235e+38
    %v110 = vmax.f32 %v99, %v109
    %111 = vrot.lane.b32.xlu0 %v110, 124
    %v112 = vpop.permute.xlu0 %111
    %vm113 = vcmp.lt.s32.totalorder %v31, 12
    %v114 = vsel %vm113, 1, 0
    %v115 = vlaneseq
    %v116 = vshrl.u32 %v115, 7
    %v117 = vsub.s32 0, %v116
    %v118 = vrot.slane %v114, %v117
    %vm119 = vcmp.eq.s32.totalorder %v118, 1
    %v120 = vsel %vm119, %v112, -3.4028235e+38
    %v121 = vmax.f32 %v110, %v120
    %122 = vrot.lane.b32.xlu0 %v121, 120
    %v123 = vpop.permute.xlu0 %122
    %vm124 = vcmp.lt.s32.totalorder %v31, 8
    %v125 = vsel %vm124, 1, 0
    %v126 = vlaneseq
    %v127 = vshrl.u32 %v126, 7
    %v128 = vsub.s32 0, %v127
    %v129 = vrot.slane %v125, %v128
    %vm130 = vcmp.eq.s32.totalorder %v129, 1
    %v131 = vsel %vm130, %v123, -3.4028235e+38
    %v132 = vmax.f32 %v121, %v131
    %v133 = vsub.f32 %v44, %v132
    %v134 = vmul.f32 %v133, 1.442695
    %v135 = vpow.pop %v134
    %136 = vrot.lane.b32.xlu0 %v135, 1
    %v137 = vpop.permute.xlu0 %136
    %v138 = vsel %vm53, %v137, 0.0
    %v139 = vadd.f32 %v135, %v138
    %140 = vrot.lane.b32.xlu0 %v139, 2
    %v141 = vpop.permute.xlu0 %140
    %v142 = vsel %vm64, %v141, 0.0
    %v143 = vadd.f32 %v139, %v142
    %144 = vrot.lane.b32.xlu0 %v143, 4
    %v145 = vpop.permute.xlu0 %144
    %v146 = vsel %vm75, %v145, 0.0
    %v147 = vadd.f32 %v143, %v146
    %148 = vrot.lane.b32.xlu0 %v147, 8
    %v149 = vpop.permute.xlu0 %148
    %v150 = vsel %vm86, %v149, 0.0
    %v151 = vadd.f32 %v147, %v150
    %152 = vrot.lane.b32.xlu0 %v151, 127
    %v153 = vpop.permute.xlu0 %152
    %v154 = vsel %vm97, %v153, 0.0
    %v155 = vmax.f32 %v151, %v154
    %156 = vrot.lane.b32.xlu0 %v155, 126
    %v157 = vpop.permute.xlu0 %156
    %v158 = vsel %vm108, %v157, 0.0
    %v159 = vmax.f32 %v155, %v158
    %160 = vrot.lane.b32.xlu0 %v159, 124
    %v161 = vpop.permute.xlu0 %160
    %v162 = vsel %vm119, %v161, 0.0
    %v163 = vmax.f32 %v159, %v162
    %164 = vrot.lane.b32.xlu0 %v163, 120
    %v165 = vpop.permute.xlu0 %164
    %v166 = vsel %vm130, %v165, 0.0
    %v167 = vmax.f32 %v163, %v166
    %v168 = vrcp.pop %v167
    %v169 = vmul.f32 %v135, %v168
    %170 = vst [vmem:[#allocation6] sm:$0xff] %v169
    // Predicated region
    $region22: #{tpu_custom_call.1} parent=1 // pred_check
      _
    $region23: #{tpu_custom_call.1} parent=1 // pred_check_branch
      %172 = sbr.rel (0) target = $region25
    $region24: #{tpu_custom_call.1} parent=1 // pred_region
      %s174 = ssub.s32 128, 128
      %175 = vsyncadd [#allocation5], %s174
      %s177 = sshll.u32 [#allocation6], 4
      %s178 = int_to_ptr.vmem [resolvable:$true] %s177
      %180 = dma.vmem_to_hbm [thread:$0]  %s178, 128, %s4, [#allocation5]
    $region25: #{tpu_custom_call.1} parent=1 // pred_fallthru
      _
    // Predicated region
    $region26: #{tpu_custom_call.1} parent=1 // pred_check
      _
    $region27: #{tpu_custom_call.1} parent=1 // pred_check_branch
      %182 = sbr.rel (0) target = $region29
    $region28: #{tpu_custom_call.1} parent=1 // pred_region
      %183 = dma.done [#allocation5], 128
    $region29: #{tpu_custom_call.1} parent=1 // pred_fallthru
      _
    %184 = vsyncpa [#allocation4], 1
    %185 = vsyncpa [#allocation5], 1

</llo_original>
